<compile_context>
chip_gen: v5e
topology: v5e:2x2
jax: 0.10.0
libtpu: 0.0.40
codegen_flags: <defaults>
</compile_context>

<pallas_src>
import functools

import jax
import jax.numpy as jnp
from jax.experimental import pallas as pl
from jax.experimental.pallas import tpu as pltpu

BN_EPS = 1e-5

# ResNet-50 stem constants
KH = KW = 7
STRIDE = 2
PAD = 3
CIN = 3
COUT = 64
COUT_PAD = 128               # lane-dense padded output channels
KDIM = CIN * KH * KW         # 147 im2col reduction dim
KPAD = 256                   # padded reduction dim (147 -> 256)


# ---------------------------------------------------------------------------
# Fused kernel: NB images per grid step (matmul + BN + ReLU + 3x3/s2/p1 pool).
# ---------------------------------------------------------------------------
def _stem_kernel(p_ref, w_ref, scale_ref, shift_ref, o_ref,
                 *, nb, oh, ow, poh, pow_):
    # p_ref     : (NB, OH, OW, KPAD) im2col patches (zero-padded K columns).
    # w_ref     : (KPAD, 128) flattened conv weights (zero padded).
    # scale_ref : (1, 128) folded BN scale (gamma / sqrt(var + eps)).
    # shift_ref : (1, 128) folded BN shift (beta - mean * scale).
    # o_ref     : (NB, POH, POW, 128) pooled output.

    # ---- conv as one MXU matmul + folded BN + ReLU --------------------------
    patches = p_ref[...].reshape(nb * oh * ow, KPAD)           # (NB*64, 256)
    acc = jnp.dot(patches, w_ref[...], preferred_element_type=jnp.float32)
    y = jnp.maximum(acc * scale_ref[...] + shift_ref[...], 0.0)
    y = y.reshape(nb, oh, ow, COUT_PAD)                        # (NB, 8, 8, 128)

    # ---- 3x3 / stride-2 / pad-1 max pool ------------------------------------
    # Zero halo is exact because y >= 0 (post-ReLU).
    zrow = jnp.zeros((1, ow, COUT_PAD), jnp.float32)           # hoisted zeros
    for b in range(nb):                                        # static, nb <= 4
        # row pass: out row i <- max of rows {2i-1, 2i, 2i+1}
        g = y[b].reshape(poh, 2, ow, COUT_PAD)      # g[i,0]=row 2i, g[i,1]=2i+1
        above = jnp.concatenate([zrow, g[:poh - 1, 1]], axis=0)   # rows 2i-1
        r = jnp.maximum(jnp.maximum(g[:, 0], g[:, 1]), above)     # (poh, ow, C)

        # column pass: out col j <- max of cols {2j-1, 2j, 2j+1}
        # (VPU maxima over 1-wide static slices; no XLU reductions)
        cols = []
        for j in range(pow_):
            m = jnp.maximum(r[:, 2 * j:2 * j + 1, :],
                            r[:, 2 * j + 1:2 * j + 2, :])
            if j > 0:
                m = jnp.maximum(m, r[:, 2 * j - 1:2 * j, :])
            cols.append(m)                                     # (poh, 1, C)
        o_ref[b] = jnp.concatenate(cols, axis=1)               # (poh, pow_, C)


# ---------------------------------------------------------------------------
# Wrapper: one im2col HLO + one pallas_call.
# ---------------------------------------------------------------------------
@jax.jit
def thermal_module_forward(x_nchw, conv_w, bn_gamma, bn_beta, bn_mean, bn_var):
    N, C, H, W = x_nchw.shape
    Cout, Cin, kh_, kw_ = conv_w.shape
    assert (C, Cin, kh_, kw_, Cout) == (CIN, CIN, KH, KW, COUT)

    OH = (H + 2 * PAD - KH) // STRIDE + 1
    OW = (W + 2 * PAD - KW) // STRIDE + 1
    assert OH % 2 == 0 and OW % 2 == 0, "pool row/col pairing needs even conv out"
    POH, POW = OH // 2, OW // 2                     # maxpool 3x3/s2/p1 output

    NB = 4 if N % 4 == 0 else (2 if N % 2 == 0 else 1)   # images per grid step
    grid_len = N // NB

    x = x_nchw.astype(jnp.float32)

    # ---- im2col in a single HLO --------------------------------------------
    # Feature ordering of the patches is channel-major (cin, kh, kw).
    # HIGHEST precision keeps the identity conv exact in f32 so the only
    # rounding happens inside the MXU dot (same as the reference conv).
    patches = jax.lax.conv_general_dilated_patches(
        x, filter_shape=(KH, KW), window_strides=(STRIDE, STRIDE),
        padding=((PAD, PAD), (PAD, PAD)),
        dimension_numbers=("NCHW", "OIHW", "NHWC"),
        precision=jax.lax.Precision.HIGHEST)            # (N, OH, OW, 147)
    patches = jnp.pad(patches, ((0, 0), (0, 0), (0, 0), (0, KPAD - KDIM)))

    # ---- weights: OIHW -> (cin, kh, kw, cout) -> (147, 64) -> (256, 128) ----
    w_mat = jnp.transpose(conv_w, (1, 2, 3, 0)).astype(jnp.float32)
    w_mat = w_mat.reshape(KDIM, COUT)
    w_mat = jnp.pad(w_mat, ((0, KPAD - KDIM), (0, COUT_PAD - COUT)))

    # ---- fold BN (eval mode) into scale / shift, pad channels to 128 --------
    scale = (bn_gamma / jnp.sqrt(bn_var + BN_EPS)).astype(jnp.float32)
    shift = (bn_beta - bn_mean * scale).astype(jnp.float32)
    scale = jnp.pad(scale.reshape(1, COUT), ((0, 0), (0, COUT_PAD - COUT)))
    shift = jnp.pad(shift.reshape(1, COUT), ((0, 0), (0, COUT_PAD - COUT)))

    kernel = functools.partial(_stem_kernel,
                               nb=NB, oh=OH, ow=OW, poh=POH, pow_=POW)

    pooled = pl.pallas_call(
        kernel,
        out_shape=jax.ShapeDtypeStruct((N, POH, POW, COUT_PAD), jnp.float32),
        grid=(grid_len,),
        in_specs=[
            pl.BlockSpec((NB, OH, OW, KPAD), lambda b: (b, 0, 0, 0)),
            pl.BlockSpec((KPAD, COUT_PAD), lambda b: (0, 0)),
            pl.BlockSpec((1, COUT_PAD), lambda b: (0, 0)),
            pl.BlockSpec((1, COUT_PAD), lambda b: (0, 0)),
        ],
        out_specs=pl.BlockSpec((NB, POH, POW, COUT_PAD),
                               lambda b: (b, 0, 0, 0)),
        compiler_params=pltpu.CompilerParams(
            dimension_semantics=("parallel",)),
    )(patches, w_mat, scale, shift)

    # drop the padded channels, return NCHW like the PyTorch module
    return jnp.transpose(pooled[..., :COUT], (0, 3, 1, 2))       # (N, 64, 4, 4)


# ---------------------------------------------------------------------------
# Pure-JAX reference for validation
# ---------------------------------------------------------------------------
def reference_forward(x, w, gamma, beta, mean, var):
    y = jax.lax.conv_general_dilated(
        x, w, window_strides=(2, 2), padding=((3, 3), (3, 3)),
        dimension_numbers=("NCHW", "OIHW", "NCHW"))
    scale = gamma / jnp.sqrt(var + BN_EPS)
    shift = beta - mean * scale
    y = y * scale[None, :, None, None] + shift[None, :, None, None]
    y = jnp.maximum(y, 0.0)
    y = jax.lax.reduce_window(
        y, -jnp.inf, jax.lax.max,
        window_dimensions=(1, 1, 3, 3), window_strides=(1, 1, 2, 2),
        padding=((0, 0), (0, 0), (1, 1), (1, 1)))
    return y


if __name__ == "__main__":
    key = jax.random.PRNGKey(0)
    kw_key, kg, kb, km, kv, kx = jax.random.split(key, 6)

    # deterministic synthetic parameters (resnet50 stem shapes)
    conv_w = jax.random.normal(kw_key, (64, 3, 7, 7), jnp.float32) * 0.05
    bn_gamma = jax.random.uniform(kg, (64,), jnp.float32, 0.5, 1.5)
    bn_beta = jax.random.normal(kb, (64,), jnp.float32) * 0.1
    bn_mean = jax.random.normal(km, (64,), jnp.float32) * 0.1
    bn_var = jax.random.uniform(kv, (64,), jnp.float32, 0.5, 1.5)

    x = jax.random.normal(kx, (2, 3, 16, 16), jnp.float32)   # NCHW input

    out = thermal_module_forward(x, conv_w, bn_gamma, bn_beta, bn_mean, bn_var)
    out = jax.block_until_ready(out)

    ref = reference_forward(x, conv_w, bn_gamma, bn_beta, bn_mean, bn_var)
    assert out.shape == (2, 64, 4, 4), out.shape
    assert jnp.allclose(out, ref, atol=1e-4, rtol=1e-4), (
        float(jnp.max(jnp.abs(out - ref))))

    print("KERNEL_OK")
</pallas_src>

<mosaic_0001>
module attributes {stable_mosaic.version = 11 : i64} {
  func.func @_stem_kernel(%arg0: i32, %arg1: memref<2x8x8x256xf32, #tpu.memory_space<vmem>>, %arg2: memref<256x128xf32, #tpu.memory_space<vmem>>, %arg3: memref<1x128xf32, #tpu.memory_space<vmem>>, %arg4: memref<1x128xf32, #tpu.memory_space<vmem>>, %arg5: memref<2x4x4x128xf32, #tpu.memory_space<vmem>>) attributes {dimension_semantics = [#tpu.dimension_semantics<parallel>], iteration_bounds = array<i64: 1>, scalar_prefetch = 0 : i64, scratch_operands = 0 : i64, tpu.core_type = #tpu.core_type<tc>, window_params = [{transform_indices = @transform_0, window_bounds = array<i64: 2, 8, 8, 256>}, {pipeline_mode = #tpu.pipeline_mode<synchronous>, transform_indices = @transform_1, window_bounds = array<i64: 256, 128>}, {pipeline_mode = #tpu.pipeline_mode<synchronous>, transform_indices = @transform_2, window_bounds = array<i64: 1, 128>}, {pipeline_mode = #tpu.pipeline_mode<synchronous>, transform_indices = @transform_3, window_bounds = array<i64: 1, 128>}, {transform_indices = @transform_4, window_bounds = array<i64: 2, 4, 4, 128>}]} {
    %c0 = arith.constant 0 : index
    %c0_0 = arith.constant 0 : index
    %c0_1 = arith.constant 0 : index
    %c0_2 = arith.constant 0 : index
    %0 = vector.load %arg1[%c0, %c0_0, %c0_1, %c0_2] : memref<2x8x8x256xf32, #tpu.memory_space<vmem>>, vector<2x8x8x256xf32>
    %1 = vector.shape_cast %0 : vector<2x8x8x256xf32> to vector<128x256xf32>
    %c0_3 = arith.constant 0 : index
    %c0_4 = arith.constant 0 : index
    %2 = vector.load %arg2[%c0_3, %c0_4] : memref<256x128xf32, #tpu.memory_space<vmem>>, vector<256x128xf32>
    %cst = arith.constant dense<0.000000e+00> : vector<128x128xf32>
    %3 = tpu.matmul %1, %2, %cst {dimension_numbers = #tpu.dot_dimension_numbers<[1], [0], [0], [1], [0, 0, 1, 1], [], []>} : vector<128x256xf32>, vector<256x128xf32>, vector<128x128xf32> -> vector<128x128xf32>
    %c0_5 = arith.constant 0 : index
    %c0_6 = arith.constant 0 : index
    %4 = vector.load %arg3[%c0_5, %c0_6] : memref<1x128xf32, #tpu.memory_space<vmem>>, vector<1x128xf32>
    %5 = vector.broadcast %4 : vector<1x128xf32> to vector<128x128xf32>
    %6 = arith.mulf %3, %5 : vector<128x128xf32>
    %c0_7 = arith.constant 0 : index
    %c0_8 = arith.constant 0 : index
    %7 = vector.load %arg4[%c0_7, %c0_8] : memref<1x128xf32, #tpu.memory_space<vmem>>, vector<1x128xf32>
    %8 = vector.broadcast %7 : vector<1x128xf32> to vector<128x128xf32>
    %9 = arith.addf %6, %8 : vector<128x128xf32>
    %cst_9 = arith.constant 0.000000e+00 : f32
    %10 = vector.broadcast %cst_9 : f32 to vector<128x128xf32>
    %11 = arith.maximumf %9, %10 : vector<128x128xf32>
    %12 = vector.shape_cast %11 : vector<128x128xf32> to vector<2x8x8x128xf32>
    %cst_10 = arith.constant 0.000000e+00 : f32
    %13 = vector.broadcast %cst_10 : f32 to vector<1x8x128xf32>
    %14 = vector.extract_strided_slice %12 {offsets = [0, 0, 0, 0], sizes = [1, 8, 8, 128], strides = [1, 1, 1, 1]} : vector<2x8x8x128xf32> to vector<1x8x8x128xf32>
    %15 = vector.shape_cast %14 : vector<1x8x8x128xf32> to vector<8x8x128xf32>
    %16 = vector.shape_cast %15 : vector<8x8x128xf32> to vector<4x2x8x128xf32>
    %17 = vector.extract_strided_slice %16 {offsets = [0, 1, 0, 0], sizes = [3, 1, 8, 128], strides = [1, 1, 1, 1]} : vector<4x2x8x128xf32> to vector<3x1x8x128xf32>
    %18 = vector.shape_cast %17 : vector<3x1x8x128xf32> to vector<3x8x128xf32>
    %19 = tpu.concatenate %13, %18 in 0 : vector<1x8x128xf32>, vector<3x8x128xf32> -> vector<4x8x128xf32>
    %20 = vector.extract_strided_slice %16 {offsets = [0, 0, 0, 0], sizes = [4, 1, 8, 128], strides = [1, 1, 1, 1]} : vector<4x2x8x128xf32> to vector<4x1x8x128xf32>
    %21 = vector.shape_cast %20 : vector<4x1x8x128xf32> to vector<4x8x128xf32>
    %22 = vector.extract_strided_slice %16 {offsets = [0, 1, 0, 0], sizes = [4, 1, 8, 128], strides = [1, 1, 1, 1]} : vector<4x2x8x128xf32> to vector<4x1x8x128xf32>
    %23 = vector.shape_cast %22 : vector<4x1x8x128xf32> to vector<4x8x128xf32>
    %24 = arith.maximumf %21, %23 : vector<4x8x128xf32>
    %25 = arith.maximumf %24, %19 : vector<4x8x128xf32>
    %26 = vector.extract_strided_slice %25 {offsets = [0, 0, 0], sizes = [4, 1, 128], strides = [1, 1, 1]} : vector<4x8x128xf32> to vector<4x1x128xf32>
    %27 = vector.extract_strided_slice %25 {offsets = [0, 1, 0], sizes = [4, 1, 128], strides = [1, 1, 1]} : vector<4x8x128xf32> to vector<4x1x128xf32>
    %28 = arith.maximumf %26, %27 : vector<4x1x128xf32>
    %29 = vector.extract_strided_slice %25 {offsets = [0, 2, 0], sizes = [4, 1, 128], strides = [1, 1, 1]} : vector<4x8x128xf32> to vector<4x1x128xf32>
    %30 = vector.extract_strided_slice %25 {offsets = [0, 3, 0], sizes = [4, 1, 128], strides = [1, 1, 1]} : vector<4x8x128xf32> to vector<4x1x128xf32>
    %31 = arith.maximumf %29, %30 : vector<4x1x128xf32>
    %32 = vector.extract_strided_slice %25 {offsets = [0, 1, 0], sizes = [4, 1, 128], strides = [1, 1, 1]} : vector<4x8x128xf32> to vector<4x1x128xf32>
    %33 = arith.maximumf %31, %32 : vector<4x1x128xf32>
    %34 = vector.extract_strided_slice %25 {offsets = [0, 4, 0], sizes = [4, 1, 128], strides = [1, 1, 1]} : vector<4x8x128xf32> to vector<4x1x128xf32>
    %35 = vector.extract_strided_slice %25 {offsets = [0, 5, 0], sizes = [4, 1, 128], strides = [1, 1, 1]} : vector<4x8x128xf32> to vector<4x1x128xf32>
    %36 = arith.maximumf %34, %35 : vector<4x1x128xf32>
    %37 = vector.extract_strided_slice %25 {offsets = [0, 3, 0], sizes = [4, 1, 128], strides = [1, 1, 1]} : vector<4x8x128xf32> to vector<4x1x128xf32>
    %38 = arith.maximumf %36, %37 : vector<4x1x128xf32>
    %39 = vector.extract_strided_slice %25 {offsets = [0, 6, 0], sizes = [4, 1, 128], strides = [1, 1, 1]} : vector<4x8x128xf32> to vector<4x1x128xf32>
    %40 = vector.extract_strided_slice %25 {offsets = [0, 7, 0], sizes = [4, 1, 128], strides = [1, 1, 1]} : vector<4x8x128xf32> to vector<4x1x128xf32>
    %41 = arith.maximumf %39, %40 : vector<4x1x128xf32>
    %42 = vector.extract_strided_slice %25 {offsets = [0, 5, 0], sizes = [4, 1, 128], strides = [1, 1, 1]} : vector<4x8x128xf32> to vector<4x1x128xf32>
    %43 = arith.maximumf %41, %42 : vector<4x1x128xf32>
    %44 = tpu.concatenate %28, %33, %38, %43 in 1 : vector<4x1x128xf32>, vector<4x1x128xf32>, vector<4x1x128xf32>, vector<4x1x128xf32> -> vector<4x4x128xf32>
    %c0_11 = arith.constant 0 : index
    %c0_12 = arith.constant 0 : index
    %c0_13 = arith.constant 0 : index
    %c0_14 = arith.constant 0 : index
    %45 = vector.load %arg5[%c0_11, %c0_12, %c0_13, %c0_14] : memref<2x4x4x128xf32, #tpu.memory_space<vmem>>, vector<1x4x4x128xf32>
    %46 = vector.shape_cast %45 : vector<1x4x4x128xf32> to vector<4x4x128xf32>
    %47 = vector.shape_cast %44 : vector<4x4x128xf32> to vector<1x4x4x128xf32>
    tpu.vector_store %arg5[%c0_11, %c0_12, %c0_13, %c0_14], %47 {strides = array<i32>} : memref<2x4x4x128xf32, #tpu.memory_space<vmem>>, vector<1x4x4x128xf32>,
    %48 = vector.extract_strided_slice %12 {offsets = [1, 0, 0, 0], sizes = [1, 8, 8, 128], strides = [1, 1, 1, 1]} : vector<2x8x8x128xf32> to vector<1x8x8x128xf32>
    %49 = vector.shape_cast %48 : vector<1x8x8x128xf32> to vector<8x8x128xf32>
    %50 = vector.shape_cast %49 : vector<8x8x128xf32> to vector<4x2x8x128xf32>
    %51 = vector.extract_strided_slice %50 {offsets = [0, 1, 0, 0], sizes = [3, 1, 8, 128], strides = [1, 1, 1, 1]} : vector<4x2x8x128xf32> to vector<3x1x8x128xf32>
    %52 = vector.shape_cast %51 : vector<3x1x8x128xf32> to vector<3x8x128xf32>
    %53 = tpu.concatenate %13, %52 in 0 : vector<1x8x128xf32>, vector<3x8x128xf32> -> vector<4x8x128xf32>
    %54 = vector.extract_strided_slice %50 {offsets = [0, 0, 0, 0], sizes = [4, 1, 8, 128], strides = [1, 1, 1, 1]} : vector<4x2x8x128xf32> to vector<4x1x8x128xf32>
    %55 = vector.shape_cast %54 : vector<4x1x8x128xf32> to vector<4x8x128xf32>
    %56 = vector.extract_strided_slice %50 {offsets = [0, 1, 0, 0], sizes = [4, 1, 8, 128], strides = [1, 1, 1, 1]} : vector<4x2x8x128xf32> to vector<4x1x8x128xf32>
    %57 = vector.shape_cast %56 : vector<4x1x8x128xf32> to vector<4x8x128xf32>
    %58 = arith.maximumf %55, %57 : vector<4x8x128xf32>
    %59 = arith.maximumf %58, %53 : vector<4x8x128xf32>
    %60 = vector.extract_strided_slice %59 {offsets = [0, 0, 0], sizes = [4, 1, 128], strides = [1, 1, 1]} : vector<4x8x128xf32> to vector<4x1x128xf32>
    %61 = vector.extract_strided_slice %59 {offsets = [0, 1, 0], sizes = [4, 1, 128], strides = [1, 1, 1]} : vector<4x8x128xf32> to vector<4x1x128xf32>
    %62 = arith.maximumf %60, %61 : vector<4x1x128xf32>
    %63 = vector.extract_strided_slice %59 {offsets = [0, 2, 0], sizes = [4, 1, 128], strides = [1, 1, 1]} : vector<4x8x128xf32> to vector<4x1x128xf32>
    %64 = vector.extract_strided_slice %59 {offsets = [0, 3, 0], sizes = [4, 1, 128], strides = [1, 1, 1]} : vector<4x8x128xf32> to vector<4x1x128xf32>
    %65 = arith.maximumf %63, %64 : vector<4x1x128xf32>
    %66 = vector.extract_strided_slice %59 {offsets = [0, 1, 0], sizes = [4, 1, 128], strides = [1, 1, 1]} : vector<4x8x128xf32> to vector<4x1x128xf32>
    %67 = arith.maximumf %65, %66 : vector<4x1x128xf32>
    %68 = vector.extract_strided_slice %59 {offsets = [0, 4, 0], sizes = [4, 1, 128], strides = [1, 1, 1]} : vector<4x8x128xf32> to vector<4x1x128xf32>
    %69 = vector.extract_strided_slice %59 {offsets = [0, 5, 0], sizes = [4, 1, 128], strides = [1, 1, 1]} : vector<4x8x128xf32> to vector<4x1x128xf32>
    %70 = arith.maximumf %68, %69 : vector<4x1x128xf32>
    %71 = vector.extract_strided_slice %59 {offsets = [0, 3, 0], sizes = [4, 1, 128], strides = [1, 1, 1]} : vector<4x8x128xf32> to vector<4x1x128xf32>
    %72 = arith.maximumf %70, %71 : vector<4x1x128xf32>
    %73 = vector.extract_strided_slice %59 {offsets = [0, 6, 0], sizes = [4, 1, 128], strides = [1, 1, 1]} : vector<4x8x128xf32> to vector<4x1x128xf32>
    %74 = vector.extract_strided_slice %59 {offsets = [0, 7, 0], sizes = [4, 1, 128], strides = [1, 1, 1]} : vector<4x8x128xf32> to vector<4x1x128xf32>
    %75 = arith.maximumf %73, %74 : vector<4x1x128xf32>
    %76 = vector.extract_strided_slice %59 {offsets = [0, 5, 0], sizes = [4, 1, 128], strides = [1, 1, 1]} : vector<4x8x128xf32> to vector<4x1x128xf32>
    %77 = arith.maximumf %75, %76 : vector<4x1x128xf32>
    %78 = tpu.concatenate %62, %67, %72, %77 in 1 : vector<4x1x128xf32>, vector<4x1x128xf32>, vector<4x1x128xf32>, vector<4x1x128xf32> -> vector<4x4x128xf32>
    %c1 = arith.constant 1 : index
    %c0_15 = arith.constant 0 : index
    %c0_16 = arith.constant 0 : index
    %c0_17 = arith.constant 0 : index
    %79 = vector.load %arg5[%c1, %c0_15, %c0_16, %c0_17] : memref<2x4x4x128xf32, #tpu.memory_space<vmem>>, vector<1x4x4x128xf32>
    %80 = vector.shape_cast %79 : vector<1x4x4x128xf32> to vector<4x4x128xf32>
    %81 = vector.shape_cast %78 : vector<4x4x128xf32> to vector<1x4x4x128xf32>
    tpu.vector_store %arg5[%c1, %c0_15, %c0_16, %c0_17], %81 {strides = array<i32>} : memref<2x4x4x128xf32, #tpu.memory_space<vmem>>, vector<1x4x4x128xf32>,
    return
  }
  func.func @transform_0(%arg0: i32) -> (i32, i32, i32, i32) {
    %c0_i32 = arith.constant 0 : i32
    %c0_i32_0 = arith.constant 0 : i32
    %c0_i32_1 = arith.constant 0 : i32
    %c0_i32_2 = arith.constant 0 : i32
    return %arg0, %c0_i32, %c0_i32_0, %c0_i32_1 : i32, i32, i32, i32
  }
  func.func @transform_1(%arg0: i32) -> (i32, i32) {
    %c0_i32 = arith.constant 0 : i32
    %c0_i32_0 = arith.constant 0 : i32
    %c0_i32_1 = arith.constant 0 : i32
    return %c0_i32, %c0_i32_0 : i32, i32
  }
  func.func @transform_2(%arg0: i32) -> (i32, i32) {
    %c0_i32 = arith.constant 0 : i32
    %c0_i32_0 = arith.constant 0 : i32
    %c0_i32_1 = arith.constant 0 : i32
    return %c0_i32, %c0_i32_0 : i32, i32
  }
  func.func @transform_3(%arg0: i32) -> (i32, i32) {
    %c0_i32 = arith.constant 0 : i32
    %c0_i32_0 = arith.constant 0 : i32
    %c0_i32_1 = arith.constant 0 : i32
    return %c0_i32, %c0_i32_0 : i32, i32
  }
  func.func @transform_4(%arg0: i32) -> (i32, i32, i32, i32) {
    %c0_i32 = arith.constant 0 : i32
    %c0_i32_0 = arith.constant 0 : i32
    %c0_i32_1 = arith.constant 0 : i32
    %c0_i32_2 = arith.constant 0 : i32
    return %arg0, %c0_i32, %c0_i32_0, %c0_i32_1 : i32, i32, i32, i32
  }
}

</mosaic_0001>

<llo_original>
// kernel: thermal_module_forward.1
$region0: #{thermal_module_forward.1}
  #allocation0 [shape = 'u32[]', space=smem, size = 0x4, offset = 0x4, fixed_abs, tag = 'smem constant byte address 0x4 - core index']
  #allocation1 [shape = 'u32[72,128]{1,0:T(1,128)}', space=vmem, size = 0x9000, scoped, tag = 'internal scratch']
  %s0 = inlined_call_operand.vmem [shape: f32[2,8,8,256], index: 0, kind: input, shape index: {}]
  %s1 = inlined_call_operand.vmem [shape: f32[256,128], index: 1, kind: input, shape index: {}]
  %s2 = inlined_call_operand.vmem [shape: f32[1,128], index: 2, kind: input, shape index: {}]
  %s3 = inlined_call_operand.vmem [shape: f32[1,128], index: 3, kind: input, shape index: {}]
  %s4 = inlined_call_operand.vmem [shape: f32[2,4,4,128], index: 4, kind: output, shape index: {}]
  %s5 = sld [smem:[#allocation0]]
  $region26: #{thermal_module_forward.1} parent=0
    _
  %s7 = ssub.s32 1, %s5
  %s8 = scalar_select 0, %s7, %s5
  // Predicated region
  $region2: #{thermal_module_forward.1} parent=0 // pred_check
    _
  $region3: #{thermal_module_forward.1} parent=0 // pred_check_branch
    %10 = sbr.rel (0) target = $region5
  $region4: #{thermal_module_forward.1} parent=0 // pred_region
    _
  $region5: #{thermal_module_forward.1} parent=0 // pred_fallthru
    _
  // Predicated region
  $region6: #{thermal_module_forward.1} parent=0 // pred_check
    _
  $region7: #{thermal_module_forward.1} parent=0 // pred_check_branch
    %12 = sbr.rel (0) target = $region9
  $region8: #{thermal_module_forward.1} parent=0 // pred_region
    _
  $region9: #{thermal_module_forward.1} parent=0 // pred_fallthru
    _
  // Predicated region
  $region10: #{thermal_module_forward.1} parent=0 // pred_check
    _
  $region11: #{thermal_module_forward.1} parent=0 // pred_check_branch
    %14 = sbr.rel (0) target = $region13
  $region12: #{thermal_module_forward.1} parent=0 // pred_region
    _
  $region13: #{thermal_module_forward.1} parent=0 // pred_fallthru
    _
  // Predicated region
  $region14: #{thermal_module_forward.1} parent=0 // pred_check
    _
  $region15: #{thermal_module_forward.1} parent=0 // pred_check_branch
    %16 = sbr.rel (0) target = $region17
  $region16: #{thermal_module_forward.1} parent=0 // pred_region
    _
  $region17: #{thermal_module_forward.1} parent=0 // pred_fallthru
    _
  %v17 = vld [vmem:[%s0] sm:$0xff]
  %v18 = vld [vmem:[%s0 + $0x8] sm:$0xff]
  %v19 = vld [vmem:[%s0 + $0x10] sm:$0xff]
  %v20 = vld [vmem:[%s0 + $0x18] sm:$0xff]
  %v21 = vld [vmem:[%s0 + $0x20] sm:$0xff]
  %v22 = vld [vmem:[%s0 + $0x28] sm:$0xff]
  %v23 = vld [vmem:[%s0 + $0x30] sm:$0xff]
  %v24 = vld [vmem:[%s0 + $0x38] sm:$0xff]
  %v25 = vld [vmem:[%s0 + $0x40] sm:$0xff]
  %v26 = vld [vmem:[%s0 + $0x48] sm:$0xff]
  %v27 = vld [vmem:[%s0 + $0x50] sm:$0xff]
  %v28 = vld [vmem:[%s0 + $0x58] sm:$0xff]
  %v29 = vld [vmem:[%s0 + $0x60] sm:$0xff]
  %v30 = vld [vmem:[%s0 + $0x68] sm:$0xff]
  %v31 = vld [vmem:[%s0 + $0x70] sm:$0xff]
  %v32 = vld [vmem:[%s0 + $0x78] sm:$0xff]
  %v33 = vld [vmem:[%s0 + $0x80] sm:$0xff]
  %v34 = vld [vmem:[%s0 + $0x88] sm:$0xff]
  %v35 = vld [vmem:[%s0 + $0x90] sm:$0xff]
  %v36 = vld [vmem:[%s0 + $0x98] sm:$0xff]
  %v37 = vld [vmem:[%s0 + $0xa0] sm:$0xff]
  %v38 = vld [vmem:[%s0 + $0xa8] sm:$0xff]
  %v39 = vld [vmem:[%s0 + $0xb0] sm:$0xff]
  %v40 = vld [vmem:[%s0 + $0xb8] sm:$0xff]
  %v41 = vld [vmem:[%s0 + $0xc0] sm:$0xff]
  %v42 = vld [vmem:[%s0 + $0xc8] sm:$0xff]
  %v43 = vld [vmem:[%s0 + $0xd0] sm:$0xff]
  %v44 = vld [vmem:[%s0 + $0xd8] sm:$0xff]
  %v45 = vld [vmem:[%s0 + $0xe0] sm:$0xff]
  %v46 = vld [vmem:[%s0 + $0xe8] sm:$0xff]
  %v47 = vld [vmem:[%s0 + $0xf0] sm:$0xff]
  %v48 = vld [vmem:[%s0 + $0xf8] sm:$0xff]
  %v49 = vld [vmem:[%s1] sm:$0xff]
  %v50 = vld [vmem:[%s1 + $0x8] sm:$0xff]
  %v51 = vld [vmem:[%s1 + $0x10] sm:$0xff]
  %v52 = vld [vmem:[%s1 + $0x18] sm:$0xff]
  %v53 = vld [vmem:[%s1 + $0x20] sm:$0xff]
  %v54 = vld [vmem:[%s1 + $0x28] sm:$0xff]
  %v55 = vld [vmem:[%s1 + $0x30] sm:$0xff]
  %v56 = vld [vmem:[%s1 + $0x38] sm:$0xff]
  %v57 = vld [vmem:[%s1 + $0x40] sm:$0xff]
  %v58 = vld [vmem:[%s1 + $0x48] sm:$0xff]
  %v59 = vld [vmem:[%s1 + $0x50] sm:$0xff]
  %v60 = vld [vmem:[%s1 + $0x58] sm:$0xff]
  %v61 = vld [vmem:[%s1 + $0x60] sm:$0xff]
  %v62 = vld [vmem:[%s1 + $0x68] sm:$0xff]
  %v63 = vld [vmem:[%s1 + $0x70] sm:$0xff]
  %v64 = vld [vmem:[%s1 + $0x78] sm:$0xff]
  %v65 = vld [vmem:[%s1 + $0x80] sm:$0xff]
  %v66 = vld [vmem:[%s1 + $0x88] sm:$0xff]
  %v67 = vld [vmem:[%s1 + $0x90] sm:$0xff]
  %v68 = vld [vmem:[%s1 + $0x98] sm:$0xff]
  %v69 = vld [vmem:[%s1 + $0xa0] sm:$0xff]
  %v70 = vld [vmem:[%s1 + $0xa8] sm:$0xff]
  %v71 = vld [vmem:[%s1 + $0xb0] sm:$0xff]
  %v72 = vld [vmem:[%s1 + $0xb8] sm:$0xff]
  %v73 = vld [vmem:[%s1 + $0xc0] sm:$0xff]
  %v74 = vld [vmem:[%s1 + $0xc8] sm:$0xff]
  %v75 = vld [vmem:[%s1 + $0xd0] sm:$0xff]
  %v76 = vld [vmem:[%s1 + $0xd8] sm:$0xff]
  %v77 = vld [vmem:[%s1 + $0xe0] sm:$0xff]
  %v78 = vld [vmem:[%s1 + $0xe8] sm:$0xff]
  %v79 = vld [vmem:[%s1 + $0xf0] sm:$0xff]
  %v80 = vld [vmem:[%s1 + $0xf8] sm:$0xff]
  %81 = vmatpush.msra.mxu0 %v64
  %82 = vmatpush.msra.mxu0 %v63
  %83 = vmatpush.msra.mxu0 %v62
  %84 = vmatpush.msra.mxu0 %v61
  %85 = vmatpush.msra.mxu0 %v60
  %86 = vmatpush.msra.mxu0 %v59
  %87 = vmatpush.msra.mxu0 %v58
  %88 = vmatpush.msra.mxu0 %v57
  %89 = vmatpush.msra.mxu0 %v56
  %90 = vmatpush.msra.mxu0 %v55
  %91 = vmatpush.msra.mxu0 %v54
  %92 = vmatpush.msra.mxu0 %v53
  %93 = vmatpush.msra.mxu0 %v52
  %94 = vmatpush.msra.mxu0 %v51
  %95 = vmatpush.msra.mxu0 %v50
  %96 = vmatpush.msra.mxu0 %v49
  %97 = vmatmul.f32.gmra.mxu0 %v17
  %v98 = vpop.f32.mrf.mxu0
  %v99 = vadd.f32 0.0, %v98
  %100 = vmatmul.f32.gmra.mxu0 %v19
  %v101 = vpop.f32.mrf.mxu0
  %v102 = vadd.f32 0.0, %v101
  %103 = vmatmul.f32.gmra.mxu0 %v21
  %v104 = vpop.f32.mrf.mxu0
  %v105 = vadd.f32 0.0, %v104
  %106 = vmatmul.f32.gmra.mxu0 %v23
  %v107 = vpop.f32.mrf.mxu0
  %v108 = vadd.f32 0.0, %v107
  %109 = vmatmul.f32.gmra.mxu0 %v25
  %v110 = vpop.f32.mrf.mxu0
  %v111 = vadd.f32 0.0, %v110
  %112 = vmatmul.f32.gmra.mxu0 %v27
  %v113 = vpop.f32.mrf.mxu0
  %v114 = vadd.f32 0.0, %v113
  %115 = vmatmul.f32.gmra.mxu0 %v29
  %v116 = vpop.f32.mrf.mxu0
  %v117 = vadd.f32 0.0, %v116
  %118 = vmatmul.f32.gmra.mxu0 %v31
  %v119 = vpop.f32.mrf.mxu0
  %v120 = vadd.f32 0.0, %v119
  %121 = vmatmul.f32.gmra.mxu0 %v33
  %v122 = vpop.f32.mrf.mxu0
  %v123 = vadd.f32 0.0, %v122
  %124 = vmatmul.f32.gmra.mxu0 %v35
  %v125 = vpop.f32.mrf.mxu0
  %v126 = vadd.f32 0.0, %v125
  %127 = vmatmul.f32.gmra.mxu0 %v37
  %v128 = vpop.f32.mrf.mxu0
  %v129 = vadd.f32 0.0, %v128
  %130 = vmatmul.f32.gmra.mxu0 %v39
  %v131 = vpop.f32.mrf.mxu0
  %v132 = vadd.f32 0.0, %v131
  %133 = vmatmul.f32.gmra.mxu0 %v41
  %v134 = vpop.f32.mrf.mxu0
  %v135 = vadd.f32 0.0, %v134
  %136 = vmatmul.f32.gmra.mxu0 %v43
  %v137 = vpop.f32.mrf.mxu0
  %v138 = vadd.f32 0.0, %v137
  %139 = vmatmul.f32.gmra.mxu0 %v45
  %v140 = vpop.f32.mrf.mxu0
  %v141 = vadd.f32 0.0, %v140
  %142 = vmatmul.f32.gmra.mxu0 %v47
  %v143 = vpop.f32.mrf.mxu0
  %v144 = vadd.f32 0.0, %v143
  %145 = vdwg.mxu0
  %146 = vmatpush.msra.mxu0 %v80
  %147 = vmatpush.msra.mxu0 %v79
  %148 = vmatpush.msra.mxu0 %v78
  %149 = vmatpush.msra.mxu0 %v77
  %150 = vmatpush.msra.mxu0 %v76
  %151 = vmatpush.msra.mxu0 %v75
  %152 = vmatpush.msra.mxu0 %v74
  %153 = vmatpush.msra.mxu0 %v73
  %154 = vmatpush.msra.mxu0 %v72
  %155 = vmatpush.msra.mxu0 %v71
  %156 = vmatpush.msra.mxu0 %v70
  %157 = vmatpush.msra.mxu0 %v69
  %158 = vmatpush.msra.mxu0 %v68
  %159 = vmatpush.msra.mxu0 %v67
  %160 = vmatpush.msra.mxu0 %v66
  %161 = vmatpush.msra.mxu0 %v65
  %162 = vmatmul.f32.gmra.mxu0 %v18
  %v163 = vpop.f32.mrf.mxu0
  %v164 = vadd.f32 %v99, %v163
  %165 = vmatmul.f32.gmra.mxu0 %v20
  %v166 = vpop.f32.mrf.mxu0
  %v167 = vadd.f32 %v102, %v166
  %168 = vmatmul.f32.gmra.mxu0 %v22
  %v169 = vpop.f32.mrf.mxu0
  %v170 = vadd.f32 %v105, %v169
  %171 = vmatmul.f32.gmra.mxu0 %v24
  %v172 = vpop.f32.mrf.mxu0
  %v173 = vadd.f32 %v108, %v172
  %174 = vmatmul.f32.gmra.mxu0 %v26
  %v175 = vpop.f32.mrf.mxu0
  %v176 = vadd.f32 %v111, %v175
  %177 = vmatmul.f32.gmra.mxu0 %v28
  %v178 = vpop.f32.mrf.mxu0
  %v179 = vadd.f32 %v114, %v178
  %180 = vmatmul.f32.gmra.mxu0 %v30
  %v181 = vpop.f32.mrf.mxu0
  %v182 = vadd.f32 %v117, %v181
  %183 = vmatmul.f32.gmra.mxu0 %v32
  %v184 = vpop.f32.mrf.mxu0
  %v185 = vadd.f32 %v120, %v184
  %186 = vmatmul.f32.gmra.mxu0 %v34
  %v187 = vpop.f32.mrf.mxu0
  %v188 = vadd.f32 %v123, %v187
  %189 = vmatmul.f32.gmra.mxu0 %v36
  %v190 = vpop.f32.mrf.mxu0
  %v191 = vadd.f32 %v126, %v190
  %192 = vmatmul.f32.gmra.mxu0 %v38
  %v193 = vpop.f32.mrf.mxu0
  %v194 = vadd.f32 %v129, %v193
  %195 = vmatmul.f32.gmra.mxu0 %v40
  %v196 = vpop.f32.mrf.mxu0
  %v197 = vadd.f32 %v132, %v196
  %198 = vmatmul.f32.gmra.mxu0 %v42
  %v199 = vpop.f32.mrf.mxu0
  %v200 = vadd.f32 %v135, %v199
  %201 = vmatmul.f32.gmra.mxu0 %v44
  %v202 = vpop.f32.mrf.mxu0
  %v203 = vadd.f32 %v138, %v202
  %204 = vmatmul.f32.gmra.mxu0 %v46
  %v205 = vpop.f32.mrf.mxu0
  %v206 = vadd.f32 %v141, %v205
  %207 = vmatmul.f32.gmra.mxu0 %v48
  %v208 = vpop.f32.mrf.mxu0
  %v209 = vadd.f32 %v144, %v208
  %210 = vdwg.mxu0
  %v211 = vld [vmem:[%s2] sm:$0x1]
  %v213 = vperm.slane %v211, 0
  %v215 = vmul.f32 %v164, %v213
  %v216 = vmul.f32 %v167, %v213
  %v217 = vmul.f32 %v170, %v213
  %v218 = vmul.f32 %v173, %v213
  %v219 = vmul.f32 %v176, %v213
  %v220 = vmul.f32 %v179, %v213
  %v221 = vmul.f32 %v182, %v213
  %v222 = vmul.f32 %v185, %v213
  %v223 = vmul.f32 %v188, %v213
  %v224 = vmul.f32 %v191, %v213
  %v225 = vmul.f32 %v194, %v213
  %v226 = vmul.f32 %v197, %v213
  %v227 = vmul.f32 %v200, %v213
  %v228 = vmul.f32 %v203, %v213
  %v229 = vmul.f32 %v206, %v213
  %v230 = vmul.f32 %v209, %v213
  %v231 = vld [vmem:[%s3] sm:$0x1]
  %v233 = vperm.slane %v231, 0
  %v235 = vadd.f32 %v215, %v233
  %v236 = vadd.f32 %v216, %v233
  %v237 = vadd.f32 %v217, %v233
  %v238 = vadd.f32 %v218, %v233
  %v239 = vadd.f32 %v219, %v233
  %v240 = vadd.f32 %v220, %v233
  %v241 = vadd.f32 %v221, %v233
  %v242 = vadd.f32 %v222, %v233
  %v243 = vadd.f32 %v223, %v233
  %v244 = vadd.f32 %v224, %v233
  %v245 = vadd.f32 %v225, %v233
  %v246 = vadd.f32 %v226, %v233
  %v247 = vadd.f32 %v227, %v233
  %v248 = vadd.f32 %v228, %v233
  %v249 = vadd.f32 %v229, %v233
  %v250 = vadd.f32 %v230, %v233
  %v251 = vmax.f32 %v235, 0.0
  %v252 = vmax.f32 %v236, 0.0
  %v253 = vmax.f32 %v237, 0.0
  %v254 = vmax.f32 %v238, 0.0
  %v255 = vmax.f32 %v239, 0.0
  %v256 = vmax.f32 %v240, 0.0
  %v257 = vmax.f32 %v241, 0.0
  %v258 = vmax.f32 %v242, 0.0
  %v259 = vmax.f32 %v243, 0.0
  %v260 = vmax.f32 %v244, 0.0
  %v261 = vmax.f32 %v245, 0.0
  %v262 = vmax.f32 %v246, 0.0
  %v263 = vmax.f32 %v247, 0.0
  %v264 = vmax.f32 %v248, 0.0
  %v265 = vmax.f32 %v249, 0.0
  %v266 = vmax.f32 %v250, 0.0
  %v267 = vmax.f32 %v251, %v252
  %v268 = vmax.f32 %v253, %v254
  %v269 = vmax.f32 %v255, %v256
  %v270 = vmax.f32 %v257, %v258
  %v271 = vmax.f32 %v267, 0.0
  %v272 = vmax.f32 %v268, %v252
  %v273 = vmax.f32 %v269, %v254
  %v274 = vmax.f32 %v270, %v256
  %v279 = vrot.slane %v271, 1
  %v280 = vrot.slane %v272, 1
  %v281 = vrot.slane %v273, 1
  %v282 = vrot.slane %v274, 1
  %v287 = vmax.f32 %v271, %v279
  %v288 = vmax.f32 %v272, %v280
  %v289 = vmax.f32 %v273, %v281
  %v290 = vmax.f32 %v274, %v282
  %v291 = vrot.slane %v271, 7
  %v292 = vrot.slane %v272, 7
  %v293 = vrot.slane %v273, 7
  %v294 = vrot.slane %v274, 7
  %v299 = vmax.f32 %v287, %v291
  %v300 = vmax.f32 %v288, %v292
  %v301 = vmax.f32 %v289, %v293
  %v302 = vmax.f32 %v290, %v294
  %v307 = vrot.slane %v299, 1
  %v308 = vrot.slane %v300, 1
  %v309 = vrot.slane %v301, 1
  %v310 = vrot.slane %v302, 1
  %v315 = vrot.slane %v299, 2
  %v316 = vrot.slane %v300, 2
  %v317 = vrot.slane %v301, 2
  %v318 = vrot.slane %v302, 2
  %v323 = vrot.slane %v299, 3
  %v324 = vrot.slane %v300, 3
  %v325 = vrot.slane %v301, 3
  %v326 = vrot.slane %v302, 3
  %vm331 = vcmask 1040384
  %v332 = vsel %vm331, %v287, %v307
  %v333 = vsel %vm331, %v288, %v308
  %v334 = vsel %vm331, %v289, %v309
  %v335 = vsel %vm331, %v290, %v310
  %vm336 = vcmask 1041408
  %v337 = vsel %vm336, %v332, %v315
  %v338 = vsel %vm336, %v333, %v316
  %v339 = vsel %vm336, %v334, %v317
  %v340 = vsel %vm336, %v335, %v318
  %vm341 = vcmask 1042432
  %v342 = vsel %vm341, %v337, %v323
  %v343 = vsel %vm341, %v338, %v324
  %v344 = vsel %vm341, %v339, %v325
  %v345 = vsel %vm341, %v340, %v326
  %346 = vst [vmem:[%s4] sm:$0xf] %v342
  %347 = vst [vmem:[%s4 + $0x4] sm:$0xf] %v343
  %348 = vst [vmem:[%s4 + $0x8] sm:$0xf] %v344
  %349 = vst [vmem:[%s4 + $0xc] sm:$0xf] %v345
  %v350 = vmax.f32 %v259, %v260
  %v351 = vmax.f32 %v261, %v262
  %v352 = vmax.f32 %v263, %v264
  %v353 = vmax.f32 %v265, %v266
  %v354 = vmax.f32 %v350, 0.0
  %v355 = vmax.f32 %v351, %v260
  %v356 = vmax.f32 %v352, %v262
  %v357 = vmax.f32 %v353, %v264
  %v362 = vrot.slane %v354, 1
  %v363 = vrot.slane %v355, 1
  %v364 = vrot.slane %v356, 1
  %v365 = vrot.slane %v357, 1
  %v370 = vmax.f32 %v354, %v362
  %v371 = vmax.f32 %v355, %v363
  %v372 = vmax.f32 %v356, %v364
  %v373 = vmax.f32 %v357, %v365
  %v374 = vrot.slane %v354, 7
  %v375 = vrot.slane %v355, 7
  %v376 = vrot.slane %v356, 7
  %v377 = vrot.slane %v357, 7
  %v382 = vmax.f32 %v370, %v374
  %v383 = vmax.f32 %v371, %v375
  %v384 = vmax.f32 %v372, %v376
  %v385 = vmax.f32 %v373, %v377
  %v390 = vrot.slane %v382, 1
  %v391 = vrot.slane %v383, 1
  %v392 = vrot.slane %v384, 1
  %v393 = vrot.slane %v385, 1
  %v398 = vrot.slane %v382, 2
  %v399 = vrot.slane %v383, 2
  %v400 = vrot.slane %v384, 2
  %v401 = vrot.slane %v385, 2
  %v406 = vrot.slane %v382, 3
  %v407 = vrot.slane %v383, 3
  %v408 = vrot.slane %v384, 3
  %v409 = vrot.slane %v385, 3
  %v414 = vsel %vm331, %v370, %v390
  %v415 = vsel %vm331, %v371, %v391
  %v416 = vsel %vm331, %v372, %v392
  %v417 = vsel %vm331, %v373, %v393
  %v418 = vsel %vm336, %v414, %v398
  %v419 = vsel %vm336, %v415, %v399
  %v420 = vsel %vm336, %v416, %v400
  %v421 = vsel %vm336, %v417, %v401
  %v422 = vsel %vm341, %v418, %v406
  %v423 = vsel %vm341, %v419, %v407
  %v424 = vsel %vm341, %v420, %v408
  %v425 = vsel %vm341, %v421, %v409
  %s426 = scalar_lea.vmem %s4, 16
  %427 = vst [vmem:[%s426] sm:$0xf] %v422
  %428 = vst [vmem:[%s426 + $0x4] sm:$0xf] %v423
  %429 = vst [vmem:[%s426 + $0x8] sm:$0xf] %v424
  %430 = vst [vmem:[%s426 + $0xc] sm:$0xf] %v425
  // Predicated region
  $region18: #{thermal_module_forward.1} parent=0 // pred_check
    _
  $region19: #{thermal_module_forward.1} parent=0 // pred_check_branch
    %432 = sbr.rel (0) target = $region21
  $region20: #{thermal_module_forward.1} parent=0 // pred_region
    _
  $region21: #{thermal_module_forward.1} parent=0 // pred_fallthru
    _
  // Predicated region
  $region22: #{thermal_module_forward.1} parent=0 // pred_check
    _
  $region23: #{thermal_module_forward.1} parent=0 // pred_check_branch
    %434 = sbr.rel (0) target = $region25
  $region24: #{thermal_module_forward.1} parent=0 // pred_region
    _
  $region25: #{thermal_module_forward.1} parent=0 // pred_fallthru
    _

</llo_original>
